<compile_context>
chip_gen: v7x
topology: tpu7x:2x2x1
jax: 0.10.0
libtpu: 0.0.40
codegen_flags: <defaults>
</compile_context>

<pallas_src>
import jax
import jax.numpy as jnp
from jax.experimental import pallas as pl
from jax.experimental.pallas import tpu as pltpu

IN_DIM, HID_DIM, OUT_DIM = 6, 128, 4
_MAX_TILE = 1024  # default batch-tile width (lanes); multiple of 128


def _mlp_math(x, w1, b1, w2s, b2, bits, o_ref):
    """fc1 -> sigmoid -> dropout -> fc2 on one batch tile.

    x:(6,TB) w1:(128,6) b1:(128,1) w2s:(4,128) (pre-scaled by 2) b2:(4,1)
    bits: int32/uint32 (128,TB) random bits for the dropout mask.
    """
    h = jnp.dot(w1, x, preferred_element_type=jnp.float32) + b1        # (128, TB)
    h = 1.0 / (1.0 + jnp.exp(-h))                                       # sigmoid
    keep = (bits & (1 << 30)) == 0                                      # P(keep)=0.5
    h = jnp.where(keep, h, 0.0)                 # dropout; x2 scale folded into w2s
    o_ref[...] = (jnp.dot(w2s, h, preferred_element_type=jnp.float32)
                  + b2).astype(o_ref.dtype)


def _kernel_hw_prng(seed_ref, x_ref, w1_ref, b1_ref, w2_ref, b2_ref, o_ref):
    # Salt the seed per batch tile -> independent dropout masks per tile.
    pltpu.prng_seed(seed_ref[0] + pl.program_id(0))
    bits = pltpu.prng_random_bits((HID_DIM, x_ref.shape[1]))
    _mlp_math(x_ref[...], w1_ref[...], b1_ref[...], w2_ref[...], b2_ref[...],
              bits, o_ref)


def _kernel_bits_in(x_ref, w1_ref, b1_ref, w2_ref, b2_ref, bits_ref, o_ref):
    # Non-TPU fallback: dropout bits are generated outside and streamed in.
    _mlp_math(x_ref[...], w1_ref[...], b1_ref[...], w2_ref[...], b2_ref[...],
              bits_ref[...], o_ref)


def net_forward(x, w1, b1, w2_scaled, b2, seed, max_tile=_MAX_TILE):
    """Forward pass of Net. x:(B,6) float32 -> (B,4) float32 (dropout active).

    w1:(128,6), b1:(128,1), b2:(4,1); w2_scaled:(4,128) must already include the
    x2 inverted-dropout scale (init_params does this).  max_tile must be a
    multiple of 128.
    """
    B = x.shape[0]
    x_t = x.T                                  # (6, B): batch on the lane axis
    tb = B if B <= max_tile else max_tile      # legal: == full dim or % 128 == 0
    grid = (pl.cdiv(B, tb),)
    out_shape = jax.ShapeDtypeStruct((OUT_DIM, B), jnp.float32)
    cparams = pltpu.CompilerParams(dimension_semantics=("parallel",))

    if jax.default_backend() == "tpu":
        # index maps receive (grid_idx, seed_ref) because of scalar prefetch.
        tile_map = lambda i, s: (0, i)
        const_map = lambda i, s: (0, 0)
        seed_arr = jnp.asarray([seed], dtype=jnp.int32)
        out_t = pl.pallas_call(
            _kernel_hw_prng,
            out_shape=out_shape,
            grid_spec=pltpu.PrefetchScalarGridSpec(
                num_scalar_prefetch=1,
                grid=grid,
                in_specs=[
                    pl.BlockSpec((IN_DIM, tb), tile_map),
                    pl.BlockSpec((HID_DIM, IN_DIM), const_map),
                    pl.BlockSpec((HID_DIM, 1), const_map),
                    pl.BlockSpec((OUT_DIM, HID_DIM), const_map),
                    pl.BlockSpec((OUT_DIM, 1), const_map),
                ],
                out_specs=pl.BlockSpec((OUT_DIM, tb), tile_map),
            ),
            compiler_params=cparams,
        )(seed_arr, x_t, w1, b1, w2_scaled, b2)
    else:
        # pltpu.prng_* has no lowering off-TPU; pre-generate the bits instead.
        tile_map = lambda i: (0, i)
        const_map = lambda i: (0, 0)
        bits = jax.random.bits(jax.random.PRNGKey(seed), (HID_DIM, B), jnp.uint32)
        out_t = pl.pallas_call(
            _kernel_bits_in,
            out_shape=out_shape,
            grid=grid,
            in_specs=[
                pl.BlockSpec((IN_DIM, tb), tile_map),
                pl.BlockSpec((HID_DIM, IN_DIM), const_map),
                pl.BlockSpec((HID_DIM, 1), const_map),
                pl.BlockSpec((OUT_DIM, HID_DIM), const_map),
                pl.BlockSpec((OUT_DIM, 1), const_map),
                pl.BlockSpec((HID_DIM, tb), tile_map),
            ],
            out_specs=pl.BlockSpec((OUT_DIM, tb), tile_map),
            compiler_params=cparams,
        )(x_t, w1, b1, w2_scaled, b2, bits)

    return out_t.T                              # back to (B, 4)


def init_params(key):
    """nn.Linear-style init, U(-1/sqrt(fan_in), +1/sqrt(fan_in)).

    Weights kept in PyTorch (out_features, in_features) layout.  The inverted
    dropout scale (1/(1-p) = 2) is folded into W2 once here, so the kernel does
    not need a per-element x2 multiply.
    """
    k1, k2, k3, k4 = jax.random.split(key, 4)
    bound1 = 1.0 / float(jnp.sqrt(float(IN_DIM)))
    bound2 = 1.0 / float(jnp.sqrt(float(HID_DIM)))
    w1 = jax.random.uniform(k1, (HID_DIM, IN_DIM), jnp.float32, -bound1, bound1)
    b1 = jax.random.uniform(k2, (HID_DIM, 1), jnp.float32, -bound1, bound1)
    w2 = jax.random.uniform(k3, (OUT_DIM, HID_DIM), jnp.float32, -bound2, bound2)
    b2 = jax.random.uniform(k4, (OUT_DIM, 1), jnp.float32, -bound2, bound2)
    return w1, b1, w2 * 2.0, b2                 # dropout scale folded into w2


if __name__ == "__main__":
    key = jax.random.PRNGKey(0)
    kx, kp = jax.random.split(key)

    B = 256                                     # small batch; 2 tiles of 128 below
    x = jax.random.normal(kx, (B, IN_DIM), jnp.float32)
    w1, b1, w2s, b2 = init_params(kp)
    seed = 1234

    out = jax.block_until_ready(net_forward(x, w1, b1, w2s, b2, seed, max_tile=128))
    out2 = jax.block_until_ready(net_forward(x, w1, b1, w2s, b2, seed, max_tile=128))

    assert out.shape == (B, OUT_DIM)
    assert bool(jnp.all(jnp.isfinite(out)))
    assert bool(jnp.array_equal(out, out2))     # same seed -> same dropout mask
    print("KERNEL_OK")
</pallas_src>

<mosaic_0001>
module attributes {stable_mosaic.version = 11 : i64} {
  func.func @_kernel_bits_in(%arg0: i32, %arg1: memref<6x128xf32, #tpu.memory_space<vmem>>, %arg2: memref<128x6xf32, #tpu.memory_space<vmem>>, %arg3: memref<128x1xf32, #tpu.memory_space<vmem>>, %arg4: memref<4x128xf32, #tpu.memory_space<vmem>>, %arg5: memref<4x1xf32, #tpu.memory_space<vmem>>, %arg6: memref<128x128xi32, #tpu.memory_space<vmem>>, %arg7: memref<4x128xf32, #tpu.memory_space<vmem>>) attributes {dimension_semantics = [#tpu.dimension_semantics<parallel>], iteration_bounds = array<i64: 2>, scalar_prefetch = 0 : i64, scratch_operands = 0 : i64, tpu.core_type = #tpu.core_type<tc>, window_params = [{transform_indices = @transform_0, window_bounds = array<i64: 6, 128>}, {pipeline_mode = #tpu.pipeline_mode<synchronous>, transform_indices = @transform_1, window_bounds = array<i64: 128, 6>}, {pipeline_mode = #tpu.pipeline_mode<synchronous>, transform_indices = @transform_2, window_bounds = array<i64: 128, 1>}, {pipeline_mode = #tpu.pipeline_mode<synchronous>, transform_indices = @transform_3, window_bounds = array<i64: 4, 128>}, {pipeline_mode = #tpu.pipeline_mode<synchronous>, transform_indices = @transform_4, window_bounds = array<i64: 4, 1>}, {transform_indices = @transform_5, window_bounds = array<i64: 128, 128>}, {transform_indices = @transform_6, window_bounds = array<i64: 4, 128>}]} {
    %c0 = arith.constant 0 : index
    %c0_0 = arith.constant 0 : index
    %0 = vector.load %arg1[%c0, %c0_0] : memref<6x128xf32, #tpu.memory_space<vmem>>, vector<6x128xf32>
    %c0_1 = arith.constant 0 : index
    %c0_2 = arith.constant 0 : index
    %1 = vector.load %arg2[%c0_1, %c0_2] : memref<128x6xf32, #tpu.memory_space<vmem>>, vector<128x6xf32>
    %c0_3 = arith.constant 0 : index
    %c0_4 = arith.constant 0 : index
    %2 = vector.load %arg3[%c0_3, %c0_4] : memref<128x1xf32, #tpu.memory_space<vmem>>, vector<128x1xf32>
    %c0_5 = arith.constant 0 : index
    %c0_6 = arith.constant 0 : index
    %3 = vector.load %arg4[%c0_5, %c0_6] : memref<4x128xf32, #tpu.memory_space<vmem>>, vector<4x128xf32>
    %c0_7 = arith.constant 0 : index
    %c0_8 = arith.constant 0 : index
    %4 = vector.load %arg5[%c0_7, %c0_8] : memref<4x1xf32, #tpu.memory_space<vmem>>, vector<4x1xf32>
    %c0_9 = arith.constant 0 : index
    %c0_10 = arith.constant 0 : index
    %5 = vector.load %arg6[%c0_9, %c0_10] : memref<128x128xi32, #tpu.memory_space<vmem>>, vector<128x128xi32>
    %cst = arith.constant dense<0.000000e+00> : vector<128x128xf32>
    %6 = tpu.matmul %1, %0, %cst {dimension_numbers = #tpu.dot_dimension_numbers<[1], [0], [0], [1], [0, 0, 1, 1], [], []>} : vector<128x6xf32>, vector<6x128xf32>, vector<128x128xf32> -> vector<128x128xf32>
    %7 = vector.broadcast %2 : vector<128x1xf32> to vector<128x128xf32>
    %8 = arith.addf %6, %7 : vector<128x128xf32>
    %cst_11 = arith.constant 0.000000e+00 : f32
    %9 = vector.broadcast %cst_11 : f32 to vector<128x128xf32>
    %10 = arith.subf %9, %8 : vector<128x128xf32>
    %11 = math.exp %10 : vector<128x128xf32>
    %cst_12 = arith.constant 1.000000e+00 : f32
    %12 = vector.broadcast %cst_12 : f32 to vector<128x128xf32>
    %13 = arith.addf %12, %11 : vector<128x128xf32>
    %cst_13 = arith.constant 1.000000e+00 : f32
    %14 = vector.broadcast %cst_13 : f32 to vector<128x128xf32>
    %15 = arith.divf %14, %13 : vector<128x128xf32>
    %c1073741824_i32 = arith.constant 1073741824 : i32
    %16 = vector.broadcast %c1073741824_i32 : i32 to vector<128x128xi32>
    %17 = arith.andi %5, %16 : vector<128x128xi32>
    %c0_i32 = arith.constant 0 : i32
    %18 = vector.broadcast %c0_i32 : i32 to vector<128x128xi32>
    %19 = arith.cmpi eq, %17, %18 : vector<128x128xi32>
    %cst_14 = arith.constant 0.000000e+00 : f32
    %20 = vector.broadcast %cst_14 : f32 to vector<128x128xf32>
    %21 = arith.select %19, %15, %20 : vector<128x128xi1>, vector<128x128xf32>
    %cst_15 = arith.constant dense<0.000000e+00> : vector<4x128xf32>
    %22 = tpu.matmul %3, %21, %cst_15 {dimension_numbers = #tpu.dot_dimension_numbers<[1], [0], [0], [1], [0, 0, 1, 1], [], []>} : vector<4x128xf32>, vector<128x128xf32>, vector<4x128xf32> -> vector<4x128xf32>
    %23 = vector.broadcast %4 : vector<4x1xf32> to vector<4x128xf32>
    %24 = arith.addf %22, %23 : vector<4x128xf32>
    %c0_16 = arith.constant 0 : index
    %c0_17 = arith.constant 0 : index
    %25 = vector.load %arg7[%c0_16, %c0_17] : memref<4x128xf32, #tpu.memory_space<vmem>>, vector<4x128xf32>
    tpu.vector_store %arg7[%c0_16, %c0_17], %24 {strides = array<i32>} : memref<4x128xf32, #tpu.memory_space<vmem>>, vector<4x128xf32>,
    return
  }
  func.func @transform_0(%arg0: i32) -> (i32, i32) {
    %c0_i32 = arith.constant 0 : i32
    %c0_i32_0 = arith.constant 0 : i32
    return %c0_i32, %arg0 : i32, i32
  }
  func.func @transform_1(%arg0: i32) -> (i32, i32) {
    %c0_i32 = arith.constant 0 : i32
    %c0_i32_0 = arith.constant 0 : i32
    %c0_i32_1 = arith.constant 0 : i32
    return %c0_i32, %c0_i32_0 : i32, i32
  }
  func.func @transform_2(%arg0: i32) -> (i32, i32) {
    %c0_i32 = arith.constant 0 : i32
    %c0_i32_0 = arith.constant 0 : i32
    %c0_i32_1 = arith.constant 0 : i32
    return %c0_i32, %c0_i32_0 : i32, i32
  }
  func.func @transform_3(%arg0: i32) -> (i32, i32) {
    %c0_i32 = arith.constant 0 : i32
    %c0_i32_0 = arith.constant 0 : i32
    %c0_i32_1 = arith.constant 0 : i32
    return %c0_i32, %c0_i32_0 : i32, i32
  }
  func.func @transform_4(%arg0: i32) -> (i32, i32) {
    %c0_i32 = arith.constant 0 : i32
    %c0_i32_0 = arith.constant 0 : i32
    %c0_i32_1 = arith.constant 0 : i32
    return %c0_i32, %c0_i32_0 : i32, i32
  }
  func.func @transform_5(%arg0: i32) -> (i32, i32) {
    %c0_i32 = arith.constant 0 : i32
    %c0_i32_0 = arith.constant 0 : i32
    return %c0_i32, %arg0 : i32, i32
  }
  func.func @transform_6(%arg0: i32) -> (i32, i32) {
    %c0_i32 = arith.constant 0 : i32
    %c0_i32_0 = arith.constant 0 : i32
    return %c0_i32, %arg0 : i32, i32
  }
}

</mosaic_0001>

<llo_original>
// kernel: tpu_custom_call.1
$region0: #{tpu_custom_call.1}
  #allocation0 [shape = 'u32[]', space=smem, size = 0x4, offset = 0x4, fixed_abs, tag = 'smem constant byte address 0x4 - core index']
  #allocation1 [shape = 'u32[144,128]{1,0:T(1,128)}', space=vmem, size = 0x12000, scoped, tag = 'internal scratch']
  %s0 = inlined_call_operand.vmem [shape: f32[6,256], index: 0, kind: input, shape index: {}]
  %s1 = inlined_call_operand.vmem [shape: f32[128,6], index: 1, kind: input, shape index: {}]
  %s2 = inlined_call_operand.vmem [shape: f32[128,1], index: 2, kind: input, shape index: {}]
  %s3 = inlined_call_operand.vmem [shape: f32[4,128], index: 3, kind: input, shape index: {}]
  %s4 = inlined_call_operand.vmem [shape: f32[4,1], index: 4, kind: input, shape index: {}]
  %s5 = inlined_call_operand.vmem [shape: u32[128,256], index: 5, kind: input, shape index: {}]
  %s6 = inlined_call_operand.hbm [shape: f32[4,256], index: 6, kind: output, shape index: {}]
  %s7 = sld [smem:[#allocation0]]
  $region95: #{tpu_custom_call.1} parent=0
    _
  %s9 = ssub.s32 1, %s7
  %s10 = scalar_select 0, %s9, %s7
  $region1: #{tpu_custom_call.1} parent=0
    #allocation2 [shape = 'u8[131072]{0}', space=vmem, size = 0x20000, scoped, tag = 'input window, operand 5']
    #allocation3 [shape = 'u8[4096]{0}', space=vmem, size = 0x1000, scoped, tag = 'output window, operand 0']
    #allocation4 [shape = 's32[2]{0}', space=sflag, size = 0x8, scoped, tag = 'scoped memory for tpu_custom_call.1']
    %11 = vsyncpa [#allocation4], 0
    %s12 = scalar_lea.sflag [#allocation4], 1
    %13 = vsyncpa %s12, 0
    loop: start=0, step=1, limit=4
    $region2: #{tpu_custom_call.1} parent=1 // loop_pre_header
      _
    $region3: #{tpu_custom_call.1} parent=1 // loop_header
      %s15 = sphi 0, %s19
      %p16 = scmp.ge.s32.totalorder %s15, 4
      %s25 = sphi 0, %s27
      %s28 = sphi 0, %s25
      %s29 = sphi 0, %s28
      %s45 = sphi 0, %s29
      %s49 = sphi 0, %s49
      %s51 = sphi 0, %s49
      %s52 = sphi 0, %s51
      %s66 = sphi 0, %s52
      %s70 = sphi 0, %s70
      %s72 = sphi 0, %s70
      %s73 = sphi 0, %s72
      %s87 = sphi 0, %s73
      %s91 = sphi 0, %s91
      %s93 = sphi 0, %s91
      %s94 = sphi 0, %s93
      %s108 = sphi 0, %s94
      %s112 = sphi 0, %s112
      %s114 = sphi 0, %s112
      %s115 = sphi 0, %s114
      %s129 = sphi 0, %s115
      %s135 = sphi 0, %s137
      %s138 = sphi 0, %s135
      %s139 = sphi 0, %s138
      %s155 = sphi 0, %s139
      %s161 = sphi 0, %s163
      %s164 = sphi 0, %s161
      %s165 = sphi 0, %s164
      %s181 = sphi 0, %s165
    $region4: #{tpu_custom_call.1} parent=1 // loop_header_branch
      %18 = sbr.rel (%p16) target = $region8
    $region5: #{tpu_custom_call.1} parent=1 // loop_body
      %s20 = ssub.s32 %s15, 1
      %s21 = ssub.s32 %s15, 2
      %s22 = sadd.s32 %s15, 1
      %s23 = ssub.s32 %s15, %s22
      %p24 = scmp.eq.s32.totalorder %s23, 0
      %s26 = sadd.s32 %s25, 1
      %s27 = scalar_select %p24, %s25, %s26
      %p30 = pneg %p24
      %p31 = scmp.eq.s32.totalorder %s15, 1
      %p32 = por %p30, %p31
      %p33 = scmp.ne.s32.totalorder %s25, %s28
      %p34 = scmp.eq.s32.totalorder %s15, 0
      %p35 = por %p33, %p34
      %p36 = scmp.ne.s32.totalorder %s25, %s28
      %p37 = scmp.eq.s32.totalorder %s20, 1
      %p38 = por %p36, %p37
      %p39 = scmp.ne.s32.totalorder %s28, %s29
      %p40 = scmp.eq.s32.totalorder %s20, 0
      %p41 = por %p39, %p40
      %p42 = scmp.ne.s32.totalorder %s28, %s29
      %p43 = scmp.eq.s32.totalorder %s21, 1
      %p44 = por %p42, %p43
      %p46 = scmp.ne.s32.totalorder %s29, %s45
      %p47 = scmp.eq.s32.totalorder %s21, 0
      %p48 = por %p46, %p47
      %s50 = sadd.s32 %s49, 1
      %p53 = scmp.eq.s32.totalorder %s15, 1
      %p54 = scmp.ne.s32.totalorder %s49, %s51
      %p55 = scmp.eq.s32.totalorder %s15, 0
      %p56 = por %p54, %p55
      %p57 = scmp.ne.s32.totalorder %s49, %s51
      %p58 = scmp.eq.s32.totalorder %s20, 1
      %p59 = por %p57, %p58
      %p60 = scmp.ne.s32.totalorder %s51, %s52
      %p61 = scmp.eq.s32.totalorder %s20, 0
      %p62 = por %p60, %p61
      %p63 = scmp.ne.s32.totalorder %s51, %s52
      %p64 = scmp.eq.s32.totalorder %s21, 1
      %p65 = por %p63, %p64
      %p67 = scmp.ne.s32.totalorder %s52, %s66
      %p68 = scmp.eq.s32.totalorder %s21, 0
      %p69 = por %p67, %p68
      %s71 = sadd.s32 %s70, 1
      %p74 = scmp.eq.s32.totalorder %s15, 1
      %p75 = scmp.ne.s32.totalorder %s70, %s72
      %p76 = scmp.eq.s32.totalorder %s15, 0
      %p77 = por %p75, %p76
      %p78 = scmp.ne.s32.totalorder %s70, %s72
      %p79 = scmp.eq.s32.totalorder %s20, 1
      %p80 = por %p78, %p79
      %p81 = scmp.ne.s32.totalorder %s72, %s73
      %p82 = scmp.eq.s32.totalorder %s20, 0
      %p83 = por %p81, %p82
      %p84 = scmp.ne.s32.totalorder %s72, %s73
      %p85 = scmp.eq.s32.totalorder %s21, 1
      %p86 = por %p84, %p85
      %p88 = scmp.ne.s32.totalorder %s73, %s87
      %p89 = scmp.eq.s32.totalorder %s21, 0
      %p90 = por %p88, %p89
      %s92 = sadd.s32 %s91, 1
      %p95 = scmp.eq.s32.totalorder %s15, 1
      %p96 = scmp.ne.s32.totalorder %s91, %s93
      %p97 = scmp.eq.s32.totalorder %s15, 0
      %p98 = por %p96, %p97
      %p99 = scmp.ne.s32.totalorder %s91, %s93
      %p100 = scmp.eq.s32.totalorder %s20, 1
      %p101 = por %p99, %p100
      %p102 = scmp.ne.s32.totalorder %s93, %s94
      %p103 = scmp.eq.s32.totalorder %s20, 0
      %p104 = por %p102, %p103
      %p105 = scmp.ne.s32.totalorder %s93, %s94
      %p106 = scmp.eq.s32.totalorder %s21, 1
      %p107 = por %p105, %p106
      %p109 = scmp.ne.s32.totalorder %s94, %s108
      %p110 = scmp.eq.s32.totalorder %s21, 0
      %p111 = por %p109, %p110
      %s113 = sadd.s32 %s112, 1
      %p116 = scmp.eq.s32.totalorder %s15, 1
      %p117 = scmp.ne.s32.totalorder %s112, %s114
      %p118 = scmp.eq.s32.totalorder %s15, 0
      %p119 = por %p117, %p118
      %p120 = scmp.ne.s32.totalorder %s112, %s114
      %p121 = scmp.eq.s32.totalorder %s20, 1
      %p122 = por %p120, %p121
      %p123 = scmp.ne.s32.totalorder %s114, %s115
      %p124 = scmp.eq.s32.totalorder %s20, 0
      %p125 = por %p123, %p124
      %p126 = scmp.ne.s32.totalorder %s114, %s115
      %p127 = scmp.eq.s32.totalorder %s21, 1
      %p128 = por %p126, %p127
      %p130 = scmp.ne.s32.totalorder %s115, %s129
      %p131 = scmp.eq.s32.totalorder %s21, 0
      %p132 = por %p130, %p131
      %s133 = ssub.s32 %s15, %s22
      %p134 = scmp.eq.s32.totalorder %s133, 0
      %s136 = sadd.s32 %s135, 1
      %s137 = scalar_select %p134, %s135, %s136
      %p140 = pneg %p134
      %p141 = scmp.eq.s32.totalorder %s15, 1
      %p142 = por %p140, %p141
      %p143 = scmp.ne.s32.totalorder %s135, %s138
      %p144 = scmp.eq.s32.totalorder %s15, 0
      %p145 = por %p143, %p144
      %p146 = scmp.ne.s32.totalorder %s135, %s138
      %p147 = scmp.eq.s32.totalorder %s20, 1
      %p148 = por %p146, %p147
      %p149 = scmp.ne.s32.totalorder %s138, %s139
      %p150 = scmp.eq.s32.totalorder %s20, 0
      %p151 = por %p149, %p150
      %p152 = scmp.ne.s32.totalorder %s138, %s139
      %p153 = scmp.eq.s32.totalorder %s21, 1
      %p154 = por %p152, %p153
      %p156 = scmp.ne.s32.totalorder %s139, %s155
      %p157 = scmp.eq.s32.totalorder %s21, 0
      %p158 = por %p156, %p157
      %s159 = ssub.s32 %s15, %s22
      %p160 = scmp.eq.s32.totalorder %s159, 0
      %s162 = sadd.s32 %s161, 1
      %s163 = scalar_select %p160, %s161, %s162
      %p166 = pneg %p160
      %p167 = scmp.eq.s32.totalorder %s15, 1
      %p168 = por %p166, %p167
      %p169 = scmp.ne.s32.totalorder %s161, %s164
      %p170 = scmp.eq.s32.totalorder %s15, 0
      %p171 = por %p169, %p170
      %p172 = scmp.ne.s32.totalorder %s161, %s164
      %p173 = scmp.eq.s32.totalorder %s20, 1
      %p174 = por %p172, %p173
      %p175 = scmp.ne.s32.totalorder %s164, %s165
      %p176 = scmp.eq.s32.totalorder %s20, 0
      %p177 = por %p175, %p176
      %p178 = scmp.ne.s32.totalorder %s164, %s165
      %p179 = scmp.eq.s32.totalorder %s21, 1
      %p180 = por %p178, %p179
      %p182 = scmp.ne.s32.totalorder %s165, %s181
      %p183 = scmp.eq.s32.totalorder %s21, 0
      %p184 = por %p182, %p183
      %p185 = scmp.le.s32.totalorder 1, %s15
      %p186 = scmp.lt.s32.totalorder %s15, 3
      %p187 = pnand %p185, %p186
      %p188 = pneg %p187
      // Predicated region
      $region9: #{tpu_custom_call.1} parent=5 // pred_check
        _
      $region10: #{tpu_custom_call.1} parent=5 // pred_check_branch
        %190 = sbr.rel (%p187) target = $region12
      $region11: #{tpu_custom_call.1} parent=5 // pred_region
        %s191 = ssub.s32 %s15, 1
        // Predicated region
        $region13: #{tpu_custom_call.1} parent=11 // pred_check
          %p192 = pneg %p62
        $region14: #{tpu_custom_call.1} parent=11 // pred_check_branch
          %194 = sbr.rel (%p192) target = $region16
        $region15: #{tpu_custom_call.1} parent=11 // pred_region
          _
        $region16: #{tpu_custom_call.1} parent=11 // pred_fallthru
          _
        // Predicated region
        $region17: #{tpu_custom_call.1} parent=11 // pred_check
          %p195 = pneg %p83
        $region18: #{tpu_custom_call.1} parent=11 // pred_check_branch
          %197 = sbr.rel (%p195) target = $region20
        $region19: #{tpu_custom_call.1} parent=11 // pred_region
          _
        $region20: #{tpu_custom_call.1} parent=11 // pred_fallthru
          _
        // Predicated region
        $region21: #{tpu_custom_call.1} parent=11 // pred_check
          %p198 = pneg %p104
        $region22: #{tpu_custom_call.1} parent=11 // pred_check_branch
          %200 = sbr.rel (%p198) target = $region24
        $region23: #{tpu_custom_call.1} parent=11 // pred_region
          _
        $region24: #{tpu_custom_call.1} parent=11 // pred_fallthru
          _
        // Predicated region
        $region25: #{tpu_custom_call.1} parent=11 // pred_check
          %p201 = pneg %p125
        $region26: #{tpu_custom_call.1} parent=11 // pred_check_branch
          %203 = sbr.rel (%p201) target = $region28
        $region27: #{tpu_custom_call.1} parent=11 // pred_region
          _
        $region28: #{tpu_custom_call.1} parent=11 // pred_fallthru
          _
      $region12: #{tpu_custom_call.1} parent=5 // pred_fallthru
        _
      %p204 = scmp.lt.s32.totalorder %s15, 2
      // Predicated region
      $region29: #{tpu_custom_call.1} parent=5 // pred_check
        %p205 = pneg %p204
      $region30: #{tpu_custom_call.1} parent=5 // pred_check_branch
        %207 = sbr.rel (%p205) target = $region32
      $region31: #{tpu_custom_call.1} parent=5 // pred_region
        // Predicated region
        $region33: #{tpu_custom_call.1} parent=31 // pred_check
          %p208 = pneg %p35
        $region34: #{tpu_custom_call.1} parent=31 // pred_check_branch
          %210 = sbr.rel (%p208) target = $region36
        $region35: #{tpu_custom_call.1} parent=31 // pred_region
          %p211 = scmp.lt.s32.totalorder %s15, 1
          %s212 = scalar_select %p211, %s15, 1
          %s213 = smul.addr %s212, 8
          %s214 = scalar_lea.vmem %s0, %s213
        $region36: #{tpu_custom_call.1} parent=31 // pred_fallthru
          _
        // Predicated region
        $region37: #{tpu_custom_call.1} parent=31 // pred_check
          %p215 = pneg %p145
        $region38: #{tpu_custom_call.1} parent=31 // pred_check_branch
          %217 = sbr.rel (%p215) target = $region40
        $region39: #{tpu_custom_call.1} parent=31 // pred_region
          %s218 = sand.u32 %s135, 1
          %s219 = sand.u32 %s135, 1
          %s220 = smul.addr %s219, 128
          %s221 = scalar_lea.vmem [#allocation2], %s220
          %s222 = smul.addr %s15, 8
          %s223 = scalar_lea.vmem %s5, %s222
          // Predicated region
          $region41: #{tpu_custom_call.1} parent=39 // pred_check
            _
          $region42: #{tpu_custom_call.1} parent=39 // pred_check_branch
            %225 = sbr.rel (0) target = $region44
          $region43: #{tpu_custom_call.1} parent=39 // pred_region
            // Predicated region
            $region45: #{tpu_custom_call.1} parent=43 // pred_check
              _
            $region46: #{tpu_custom_call.1} parent=43 // pred_check_branch
              %227 = sbr.rel (0) target = $region48
            $region47: #{tpu_custom_call.1} parent=43 // pred_region
              // Predicated region
              $region60: #{tpu_custom_call.1} parent=47 // pred_check
                _
              $region61: #{tpu_custom_call.1} parent=47 // pred_check_branch
                %272 = sbr.rel (0) target = $region63
              $region62: #{tpu_custom_call.1} parent=47 // pred_region
                loop: start=0, step=1, limit=1
                $region64: #{tpu_custom_call.1} parent=62 // loop_pre_header
                  _
                $region65: #{tpu_custom_call.1} parent=62 // loop_header
                  %s274 = sphi 0, %s278
                  %p275 = scmp.ge.s32.totalorder %s274, 1
                  %s279 = sphi %s223, %s223
                  %s280 = sphi %s221, %s221
                $region66: #{tpu_custom_call.1} parent=62 // loop_header_branch
                  %277 = sbr.rel (%p275) target = $region70
                $region67: #{tpu_custom_call.1} parent=62 // loop_body
                  %v281 = vld [vmem:[%s279] sm:$0xff]
                  %282 = vst [vmem:[%s280] sm:$0xff] %v281
                  %v283 = vld [vmem:[%s279 + $0x10] sm:$0xff]
                  %284 = vst [vmem:[%s280 + $0x8] sm:$0xff] %v283
                  %v285 = vld [vmem:[%s279 + $0x20] sm:$0xff]
                  %286 = vst [vmem:[%s280 + $0x10] sm:$0xff] %v285
                  %v287 = vld [vmem:[%s279 + $0x30] sm:$0xff]
                  %288 = vst [vmem:[%s280 + $0x18] sm:$0xff] %v287
                  %v289 = vld [vmem:[%s279 + $0x40] sm:$0xff]
                  %290 = vst [vmem:[%s280 + $0x20] sm:$0xff] %v289
                  %v291 = vld [vmem:[%s279 + $0x50] sm:$0xff]
                  %292 = vst [vmem:[%s280 + $0x28] sm:$0xff] %v291
                  %v293 = vld [vmem:[%s279 + $0x60] sm:$0xff]
                  %294 = vst [vmem:[%s280 + $0x30] sm:$0xff] %v293
                  %v295 = vld [vmem:[%s279 + $0x70] sm:$0xff]
                  %296 = vst [vmem:[%s280 + $0x38] sm:$0xff] %v295
                  %v297 = vld [vmem:[%s279 + $0x80] sm:$0xff]
                  %298 = vst [vmem:[%s280 + $0x40] sm:$0xff] %v297
                  %v299 = vld [vmem:[%s279 + $0x90] sm:$0xff]
                  %300 = vst [vmem:[%s280 + $0x48] sm:$0xff] %v299
                  %v301 = vld [vmem:[%s279 + $0xa0] sm:$0xff]
                  %302 = vst [vmem:[%s280 + $0x50] sm:$0xff] %v301
                  %v303 = vld [vmem:[%s279 + $0xb0] sm:$0xff]
                  %304 = vst [vmem:[%s280 + $0x58] sm:$0xff] %v303
                  %v305 = vld [vmem:[%s279 + $0xc0] sm:$0xff]
                  %306 = vst [vmem:[%s280 + $0x60] sm:$0xff] %v305
                  %v307 = vld [vmem:[%s279 + $0xd0] sm:$0xff]
                  %308 = vst [vmem:[%s280 + $0x68] sm:$0xff] %v307
                  %v309 = vld [vmem:[%s279 + $0xe0] sm:$0xff]
                  %310 = vst [vmem:[%s280 + $0x70] sm:$0xff] %v309
                  %v311 = vld [vmem:[%s279 + $0xf0] sm:$0xff]
                  %312 = vst [vmem:[%s280 + $0x78] sm:$0xff] %v311
                $region68: #{tpu_custom_call.1} parent=62 // loop_footer
                  %s278 = sadd.s32 1, %s274
                $region69: #{tpu_custom_call.1} parent=62 // loop_footer_branch
                  %273 = sbr.rel target = $region65
                $region70: #{tpu_custom_call.1} parent=62 // loop_exit
                  _
              $region63: #{tpu_custom_call.1} parent=47 // pred_fallthru
                _
              // Predicated region
              $region71: #{tpu_custom_call.1} parent=47 // pred_check
                _
              $region72: #{tpu_custom_call.1} parent=47 // pred_check_branch
                %314 = sbr.rel target = $region74
              $region73: #{tpu_custom_call.1} parent=47 // pred_region
                _
              $region74: #{tpu_custom_call.1} parent=47 // pred_fallthru
                _
            $region48: #{tpu_custom_call.1} parent=43 // pred_fallthru
              _
            // Predicated region
            $region49: #{tpu_custom_call.1} parent=43 // pred_check
              _
            $region50: #{tpu_custom_call.1} parent=43 // pred_check_branch
              %229 = sbr.rel target = $region52
            $region51: #{tpu_custom_call.1} parent=43 // pred_region
              loop: start=0, step=1, limit=1
              $region53: #{tpu_custom_call.1} parent=51 // loop_pre_header
                _
              $region54: #{tpu_custom_call.1} parent=51 // loop_header
                %s232 = sphi 0, %s236
                %p233 = scmp.ge.s32.totalorder %s232, 1
                %s237 = sphi %s223, %s223
                %s238 = sphi %s221, %s221
              $region55: #{tpu_custom_call.1} parent=51 // loop_header_branch
                %235 = sbr.rel (%p233) target = $region59
              $region56: #{tpu_custom_call.1} parent=51 // loop_body
                %v239 = vld [vmem:[%s237] sm:$0xff]
                %240 = vst [vmem:[%s238] sm:$0xff] %v239
                %v241 = vld [vmem:[%s237 + $0x10] sm:$0xff]
                %242 = vst [vmem:[%s238 + $0x8] sm:$0xff] %v241
                %v243 = vld [vmem:[%s237 + $0x20] sm:$0xff]
                %244 = vst [vmem:[%s238 + $0x10] sm:$0xff] %v243
                %v245 = vld [vmem:[%s237 + $0x30] sm:$0xff]
                %246 = vst [vmem:[%s238 + $0x18] sm:$0xff] %v245
                %v247 = vld [vmem:[%s237 + $0x40] sm:$0xff]
                %248 = vst [vmem:[%s238 + $0x20] sm:$0xff] %v247
                %v249 = vld [vmem:[%s237 + $0x50] sm:$0xff]
                %250 = vst [vmem:[%s238 + $0x28] sm:$0xff] %v249
                %v251 = vld [vmem:[%s237 + $0x60] sm:$0xff]
                %252 = vst [vmem:[%s238 + $0x30] sm:$0xff] %v251
                %v253 = vld [vmem:[%s237 + $0x70] sm:$0xff]
                %254 = vst [vmem:[%s238 + $0x38] sm:$0xff] %v253
                %v255 = vld [vmem:[%s237 + $0x80] sm:$0xff]
                %256 = vst [vmem:[%s238 + $0x40] sm:$0xff] %v255
                %v257 = vld [vmem:[%s237 + $0x90] sm:$0xff]
                %258 = vst [vmem:[%s238 + $0x48] sm:$0xff] %v257
                %v259 = vld [vmem:[%s237 + $0xa0] sm:$0xff]
                %260 = vst [vmem:[%s238 + $0x50] sm:$0xff] %v259
                %v261 = vld [vmem:[%s237 + $0xb0] sm:$0xff]
                %262 = vst [vmem:[%s238 + $0x58] sm:$0xff] %v261
                %v263 = vld [vmem:[%s237 + $0xc0] sm:$0xff]
                %264 = vst [vmem:[%s238 + $0x60] sm:$0xff] %v263
                %v265 = vld [vmem:[%s237 + $0xd0] sm:$0xff]
                %266 = vst [vmem:[%s238 + $0x68] sm:$0xff] %v265
                %v267 = vld [vmem:[%s237 + $0xe0] sm:$0xff]
                %268 = vst [vmem:[%s238 + $0x70] sm:$0xff] %v267
                %v269 = vld [vmem:[%s237 + $0xf0] sm:$0xff]
                %270 = vst [vmem:[%s238 + $0x78] sm:$0xff] %v269
              $region57: #{tpu_custom_call.1} parent=51 // loop_footer
                %s236 = sadd.s32 1, %s232
              $region58: #{tpu_custom_call.1} parent=51 // loop_footer_branch
                %231 = sbr.rel target = $region54
              $region59: #{tpu_custom_call.1} parent=51 // loop_exit
                _
            $region52: #{tpu_custom_call.1} parent=43 // pred_fallthru
              _
          $region44: #{tpu_custom_call.1} parent=39 // pred_fallthru
            _
          %315 = vnop
        $region40: #{tpu_custom_call.1} parent=31 // pred_fallthru
          _
      $region32: #{tpu_custom_call.1} parent=5 // pred_fallthru
        _
      %p316 = scmp.le.s32.totalorder 1, %s15
      %p317 = scmp.lt.s32.totalorder %s15, 3
      %p318 = pnand %p316, %p317
      %p319 = pneg %p318
      // Predicated region
      $region75: #{tpu_custom_call.1} parent=5 // pred_check
        _
      $region76: #{tpu_custom_call.1} parent=5 // pred_check_branch
        %321 = sbr.rel (%p318) target = $region78
      $region77: #{tpu_custom_call.1} parent=5 // pred_region
        %s322 = ssub.s32 %s15, 1
        %s323 = sand.u32 %s138, 1
        %s324 = sand.u32 %s138, 1
        %s325 = smul.addr %s324, 128
        %s326 = scalar_lea.vmem [#allocation2], %s325
        // Predicated region
        $region79: #{tpu_custom_call.1} parent=77 // pred_check
          %p327 = pneg %p151
        $region80: #{tpu_custom_call.1} parent=77 // pred_check_branch
          %329 = sbr.rel (%p327) target = $region82
        $region81: #{tpu_custom_call.1} parent=77 // pred_region
          _
        $region82: #{tpu_custom_call.1} parent=77 // pred_fallthru
          _
        %p330 = scmp.lt.s32.totalorder %s20, 1
        %s331 = scalar_select %p330, %s20, 1
        %s332 = smul.addr %s331, 8
        %s333 = scalar_lea.vmem %s0, %s332
        %p334 = pneg %p41
        %p335 = pneg %p38
        %p336 = pneg %p62
        %p337 = pneg %p59
        %p338 = pneg %p83
        %p339 = pneg %p80
        %p340 = pneg %p104
        %p341 = pneg %p101
        %p342 = pneg %p125
        %p343 = pneg %p122
        %s344 = sand.u32 %s138, 1
        %s345 = sand.u32 %s138, 1
        %s346 = smul.addr %s345, 128
        %s347 = scalar_lea.vmem [#allocation2], %s346
        %p348 = pneg %p151
        %p349 = pneg %p148
        %p350 = pneg %p177
        %p351 = pneg %p174
        %s352 = sand.u32 %s164, 1
        %s353 = scalar_lea.sflag [#allocation4], %s352
        %s354 = sand.u32 %s164, 1
        %s355 = smul.addr %s354, 4
        %s356 = scalar_lea.vmem [#allocation3], %s355
        %p357 = scmp.lt.s32.totalorder %s20, 1
        %s358 = scalar_select %p357, %s20, 1
        %s359 = smul.addr %s358, 8
        %s360 = scalar_lea.vmem %s0, %s359
        %v361 = vld [vmem:[%s360] sm:$0x3f]
        %v362 = vld [vmem:[%s1] sm:$0xff]
        %v363 = vld [vmem:[%s1 + $0x8] sm:$0xff]
        %v364 = vld [vmem:[%s1 + $0x10] sm:$0xff]
        %v365 = vld [vmem:[%s1 + $0x18] sm:$0xff]
        %v366 = vld [vmem:[%s1 + $0x20] sm:$0xff]
        %v367 = vld [vmem:[%s1 + $0x28] sm:$0xff]
        %v368 = vld [vmem:[%s1 + $0x30] sm:$0xff]
        %v369 = vld [vmem:[%s1 + $0x38] sm:$0xff]
        %v370 = vld [vmem:[%s1 + $0x40] sm:$0xff]
        %v371 = vld [vmem:[%s1 + $0x48] sm:$0xff]
        %v372 = vld [vmem:[%s1 + $0x50] sm:$0xff]
        %v373 = vld [vmem:[%s1 + $0x58] sm:$0xff]
        %v374 = vld [vmem:[%s1 + $0x60] sm:$0xff]
        %v375 = vld [vmem:[%s1 + $0x68] sm:$0xff]
        %v376 = vld [vmem:[%s1 + $0x70] sm:$0xff]
        %v377 = vld [vmem:[%s1 + $0x78] sm:$0xff]
        %v378 = vld [vmem:[%s2] sm:$0xff]
        %v379 = vld [vmem:[%s2 + $0x8] sm:$0xff]
        %v380 = vld [vmem:[%s2 + $0x10] sm:$0xff]
        %v381 = vld [vmem:[%s2 + $0x18] sm:$0xff]
        %v382 = vld [vmem:[%s2 + $0x20] sm:$0xff]
        %v383 = vld [vmem:[%s2 + $0x28] sm:$0xff]
        %v384 = vld [vmem:[%s2 + $0x30] sm:$0xff]
        %v385 = vld [vmem:[%s2 + $0x38] sm:$0xff]
        %v386 = vld [vmem:[%s2 + $0x40] sm:$0xff]
        %v387 = vld [vmem:[%s2 + $0x48] sm:$0xff]
        %v388 = vld [vmem:[%s2 + $0x50] sm:$0xff]
        %v389 = vld [vmem:[%s2 + $0x58] sm:$0xff]
        %v390 = vld [vmem:[%s2 + $0x60] sm:$0xff]
        %v391 = vld [vmem:[%s2 + $0x68] sm:$0xff]
        %v392 = vld [vmem:[%s2 + $0x70] sm:$0xff]
        %v393 = vld [vmem:[%s2 + $0x78] sm:$0xff]
        %v394 = vld [vmem:[%s3] sm:$0xf]
        %v395 = vld [vmem:[%s4] sm:$0xf]
        %v396 = vld [vmem:[%s326] sm:$0xff]
        %v397 = vld [vmem:[%s326 + $0x8] sm:$0xff]
        %v398 = vld [vmem:[%s326 + $0x10] sm:$0xff]
        %v399 = vld [vmem:[%s326 + $0x18] sm:$0xff]
        %v400 = vld [vmem:[%s326 + $0x20] sm:$0xff]
        %v401 = vld [vmem:[%s326 + $0x28] sm:$0xff]
        %v402 = vld [vmem:[%s326 + $0x30] sm:$0xff]
        %v403 = vld [vmem:[%s326 + $0x38] sm:$0xff]
        %v404 = vld [vmem:[%s326 + $0x40] sm:$0xff]
        %v405 = vld [vmem:[%s326 + $0x48] sm:$0xff]
        %v406 = vld [vmem:[%s326 + $0x50] sm:$0xff]
        %v407 = vld [vmem:[%s326 + $0x58] sm:$0xff]
        %v408 = vld [vmem:[%s326 + $0x60] sm:$0xff]
        %v409 = vld [vmem:[%s326 + $0x68] sm:$0xff]
        %v410 = vld [vmem:[%s326 + $0x70] sm:$0xff]
        %v411 = vld [vmem:[%s326 + $0x78] sm:$0xff]
        %413 = vset.pattern.permute.xlu0 0
        %414 = vperm.xlu0 %413, %v378
        %v415 = vpop.permute.xlu0 %414
        %418 = vset.pattern.permute.xlu0 0
        %419 = vperm.xlu0 %418, %v379
        %v420 = vpop.permute.xlu0 %419
        %423 = vset.pattern.permute.xlu0 0
        %424 = vperm.xlu0 %423, %v380
        %v425 = vpop.permute.xlu0 %424
        %428 = vset.pattern.permute.xlu0 0
        %429 = vperm.xlu0 %428, %v381
        %v430 = vpop.permute.xlu0 %429
        %433 = vset.pattern.permute.xlu0 0
        %434 = vperm.xlu0 %433, %v382
        %v435 = vpop.permute.xlu0 %434
        %438 = vset.pattern.permute.xlu0 0
        %439 = vperm.xlu0 %438, %v383
        %v440 = vpop.permute.xlu0 %439
        %443 = vset.pattern.permute.xlu0 0
        %444 = vperm.xlu0 %443, %v384
        %v445 = vpop.permute.xlu0 %444
        %448 = vset.pattern.permute.xlu0 0
        %449 = vperm.xlu0 %448, %v385
        %v450 = vpop.permute.xlu0 %449
        %453 = vset.pattern.permute.xlu0 0
        %454 = vperm.xlu0 %453, %v386
        %v455 = vpop.permute.xlu0 %454
        %458 = vset.pattern.permute.xlu0 0
        %459 = vperm.xlu0 %458, %v387
        %v460 = vpop.permute.xlu0 %459
        %463 = vset.pattern.permute.xlu0 0
        %464 = vperm.xlu0 %463, %v388
        %v465 = vpop.permute.xlu0 %464
        %468 = vset.pattern.permute.xlu0 0
        %469 = vperm.xlu0 %468, %v389
        %v470 = vpop.permute.xlu0 %469
        %473 = vset.pattern.permute.xlu0 0
        %474 = vperm.xlu0 %473, %v390
        %v475 = vpop.permute.xlu0 %474
        %478 = vset.pattern.permute.xlu0 0
        %479 = vperm.xlu0 %478, %v391
        %v480 = vpop.permute.xlu0 %479
        %483 = vset.pattern.permute.xlu0 0
        %484 = vperm.xlu0 %483, %v392
        %v485 = vpop.permute.xlu0 %484
        %488 = vset.pattern.permute.xlu0 0
        %489 = vperm.xlu0 %488, %v393
        %v490 = vpop.permute.xlu0 %489
        %vm492 = vcmask 48128
        %v494 = vsel %vm492, %v362, 0
        %v497 = vsel %vm492, %v363, 0
        %v500 = vsel %vm492, %v364, 0
        %v503 = vsel %vm492, %v365, 0
        %v506 = vsel %vm492, %v366, 0
        %v509 = vsel %vm492, %v367, 0
        %v512 = vsel %vm492, %v368, 0
        %v515 = vsel %vm492, %v369, 0
        %v518 = vsel %vm492, %v370, 0
        %v521 = vsel %vm492, %v371, 0
        %v524 = vsel %vm492, %v372, 0
        %v527 = vsel %vm492, %v373, 0
        %v530 = vsel %vm492, %v374, 0
        %v533 = vsel %vm492, %v375, 0
        %v536 = vsel %vm492, %v376, 0
        %v539 = vsel %vm492, %v377, 0
        %vm541 = vcmask 1045504
        %v543 = vsel %vm541, %v361, 0
        %545 = vmatprep.subr.mxu0 0.0
        %546 = vmatpush1.msra.mxu0 %v543
        %547 = vmatprep.subr.mxu0 0.0
        %548 = vmatpush1.msra.mxu0 0.0
        %549 = vmatprep.subr.mxu0 0.0
        %550 = vmatpush1.msra.mxu0 0.0
        %551 = vmatprep.subr.mxu0 0.0
        %552 = vmatpush1.msra.mxu0 0.0
        %553 = vmatprep.subr.mxu0 0.0
        %554 = vmatpush1.msra.mxu0 0.0
        %555 = vmatprep.subr.mxu0 0.0
        %556 = vmatpush1.msra.mxu0 0.0
        %557 = vmatprep.subr.mxu0 0.0
        %558 = vmatpush1.msra.mxu0 0.0
        %559 = vmatprep.subr.mxu0 0.0
        %560 = vmatpush1.msra.mxu0 0.0
        %561 = vmatprep.subr.mxu0 0.0
        %562 = vmatpush1.msra.mxu0 0.0
        %563 = vmatprep.subr.mxu0 0.0
        %564 = vmatpush1.msra.mxu0 0.0
        %565 = vmatprep.subr.mxu0 0.0
        %566 = vmatpush1.msra.mxu0 0.0
        %567 = vmatprep.subr.mxu0 0.0
        %568 = vmatpush1.msra.mxu0 0.0
        %569 = vmatprep.subr.mxu0 0.0
        %570 = vmatpush1.msra.mxu0 0.0
        %571 = vmatprep.subr.mxu0 0.0
        %572 = vmatpush1.msra.mxu0 0.0
        %573 = vmatprep.subr.mxu0 0.0
        %574 = vmatpush1.msra.mxu0 0.0
        %575 = vmatprep.subr.mxu0 0.0
        %576 = vmatpush1.msra.mxu0 0.0
        %577 = vmatprep.subr.mxu0 0.0
        %578 = vmatpush1.msra.mxu0 0.0
        %579 = vmatprep.subr.mxu0 0.0
        %580 = vmatpush1.msra.mxu0 0.0
        %581 = vmatprep.subr.mxu0 0.0
        %582 = vmatpush1.msra.mxu0 0.0
        %583 = vmatprep.subr.mxu0 0.0
        %584 = vmatpush1.msra.mxu0 0.0
        %585 = vmatprep.subr.mxu0 0.0
        %586 = vmatpush1.msra.mxu0 0.0
        %587 = vmatprep.subr.mxu0 0.0
        %588 = vmatpush1.msra.mxu0 0.0
        %589 = vmatprep.subr.mxu0 0.0
        %590 = vmatpush1.msra.mxu0 0.0
        %591 = vmatprep.subr.mxu0 0.0
        %592 = vmatpush1.msra.mxu0 0.0
        %593 = vmatprep.subr.mxu0 0.0
        %594 = vmatpush1.msra.mxu0 0.0
        %595 = vmatprep.subr.mxu0 0.0
        %596 = vmatpush1.msra.mxu0 0.0
        %597 = vmatprep.subr.mxu0 0.0
        %598 = vmatpush1.msra.mxu0 0.0
        %599 = vmatprep.subr.mxu0 0.0
        %600 = vmatpush1.msra.mxu0 0.0
        %601 = vmatprep.subr.mxu0 0.0
        %602 = vmatpush1.msra.mxu0 0.0
        %603 = vmatprep.subr.mxu0 0.0
        %604 = vmatpush1.msra.mxu0 0.0
        %605 = vmatprep.subr.mxu0 0.0
        %606 = vmatpush1.msra.mxu0 0.0
        %607 = vmatprep.subr.mxu0 0.0
        %608 = vmatpush1.msra.mxu0 0.0
        %609 = vmatprep.mubr.f32.mxu0 0.0
        %610 = vmatmul.mubr.f32.gmra.mrb[0].mxu0 %v494
        %v611 = vpop.f32.mrb[0].mxu0
        %v612 = vadd.f32 %v415, %v611
        %v613 = vpop.f32.mrb[0].mxu0
        %614 = vmatprep.mubr.f32.mxu0 0.0
        %615 = vmatmul.mubr.f32.gmra.mrb[0].mxu0 %v497
        %v616 = vpop.f32.mrb[0].mxu0
        %v617 = vadd.f32 %v420, %v616
        %v618 = vpop.f32.mrb[0].mxu0
        %619 = vmatprep.mubr.f32.mxu0 0.0
        %620 = vmatmul.mubr.f32.gmra.mrb[0].mxu0 %v500
        %v621 = vpop.f32.mrb[0].mxu0
        %v622 = vadd.f32 %v425, %v621
        %v623 = vpop.f32.mrb[0].mxu0
        %624 = vmatprep.mubr.f32.mxu0 0.0
        %625 = vmatmul.mubr.f32.gmra.mrb[0].mxu0 %v503
        %v626 = vpop.f32.mrb[0].mxu0
        %v627 = vadd.f32 %v430, %v626
        %v628 = vpop.f32.mrb[0].mxu0
        %629 = vmatprep.mubr.f32.mxu0 0.0
        %630 = vmatmul.mubr.f32.gmra.mrb[0].mxu0 %v506
        %v631 = vpop.f32.mrb[0].mxu0
        %v632 = vadd.f32 %v435, %v631
        %v633 = vpop.f32.mrb[0].mxu0
        %634 = vmatprep.mubr.f32.mxu0 0.0
        %635 = vmatmul.mubr.f32.gmra.mrb[0].mxu0 %v509
        %v636 = vpop.f32.mrb[0].mxu0
        %v637 = vadd.f32 %v440, %v636
        %v638 = vpop.f32.mrb[0].mxu0
        %639 = vmatprep.mubr.f32.mxu0 0.0
        %640 = vmatmul.mubr.f32.gmra.mrb[0].mxu0 %v512
        %v641 = vpop.f32.mrb[0].mxu0
        %v642 = vadd.f32 %v445, %v641
        %v643 = vpop.f32.mrb[0].mxu0
        %644 = vmatprep.mubr.f32.mxu0 0.0
        %645 = vmatmul.mubr.f32.gmra.mrb[0].mxu0 %v515
        %v646 = vpop.f32.mrb[0].mxu0
        %v647 = vadd.f32 %v450, %v646
        %v648 = vpop.f32.mrb[0].mxu0
        %649 = vmatprep.mubr.f32.mxu0 0.0
        %650 = vmatmul.mubr.f32.gmra.mrb[0].mxu0 %v518
        %v651 = vpop.f32.mrb[0].mxu0
        %v652 = vadd.f32 %v455, %v651
        %v653 = vpop.f32.mrb[0].mxu0
        %654 = vmatprep.mubr.f32.mxu0 0.0
        %655 = vmatmul.mubr.f32.gmra.mrb[0].mxu0 %v521
        %v656 = vpop.f32.mrb[0].mxu0
        %v657 = vadd.f32 %v460, %v656
        %v658 = vpop.f32.mrb[0].mxu0
        %659 = vmatprep.mubr.f32.mxu0 0.0
        %660 = vmatmul.mubr.f32.gmra.mrb[0].mxu0 %v524
        %v661 = vpop.f32.mrb[0].mxu0
        %v662 = vadd.f32 %v465, %v661
        %v663 = vpop.f32.mrb[0].mxu0
        %664 = vmatprep.mubr.f32.mxu0 0.0
        %665 = vmatmul.mubr.f32.gmra.mrb[0].mxu0 %v527
        %v666 = vpop.f32.mrb[0].mxu0
        %v667 = vadd.f32 %v470, %v666
        %v668 = vpop.f32.mrb[0].mxu0
        %669 = vmatprep.mubr.f32.mxu0 0.0
        %670 = vmatmul.mubr.f32.gmra.mrb[0].mxu0 %v530
        %v671 = vpop.f32.mrb[0].mxu0
        %v672 = vadd.f32 %v475, %v671
        %v673 = vpop.f32.mrb[0].mxu0
        %674 = vmatprep.mubr.f32.mxu0 0.0
        %675 = vmatmul.mubr.f32.gmra.mrb[0].mxu0 %v533
        %v676 = vpop.f32.mrb[0].mxu0
        %v677 = vadd.f32 %v480, %v676
        %v678 = vpop.f32.mrb[0].mxu0
        %679 = vmatprep.mubr.f32.mxu0 0.0
        %680 = vmatmul.mubr.f32.gmra.mrb[0].mxu0 %v536
        %v681 = vpop.f32.mrb[0].mxu0
        %v682 = vadd.f32 %v485, %v681
        %v683 = vpop.f32.mrb[0].mxu0
        %684 = vmatprep.mubr.f32.mxu0 0.0
        %685 = vmatmul.mubr.f32.gmra.mrb[0].mxu0 %v539
        %v686 = vpop.f32.mrb[0].mxu0
        %v687 = vadd.f32 %v490, %v686
        %v688 = vpop.f32.mrb[0].mxu0
        %689 = vdwg.mxu0
        %v690 = vsub.f32 0.0, %v612
        %v691 = vsub.f32 0.0, %v617
        %v692 = vsub.f32 0.0, %v622
        %v693 = vsub.f32 0.0, %v627
        %v694 = vsub.f32 0.0, %v632
        %v695 = vsub.f32 0.0, %v637
        %v696 = vsub.f32 0.0, %v642
        %v697 = vsub.f32 0.0, %v647
        %v698 = vsub.f32 0.0, %v652
        %v699 = vsub.f32 0.0, %v657
        %v700 = vsub.f32 0.0, %v662
        %v701 = vsub.f32 0.0, %v667
        %v702 = vsub.f32 0.0, %v672
        %v703 = vsub.f32 0.0, %v677
        %v704 = vsub.f32 0.0, %v682
        %v705 = vsub.f32 0.0, %v687
        %v706 = vmul.f32 %v690, 1.442695
        %v707 = vpow.pop %v706
        %v708 = vmul.f32 %v691, 1.442695
        %v709 = vpow.pop %v708
        %v710 = vmul.f32 %v692, 1.442695
        %v711 = vpow.pop %v710
        %v712 = vmul.f32 %v693, 1.442695
        %v713 = vpow.pop %v712
        %v714 = vmul.f32 %v694, 1.442695
        %v715 = vpow.pop %v714
        %v716 = vmul.f32 %v695, 1.442695
        %v717 = vpow.pop %v716
        %v718 = vmul.f32 %v696, 1.442695
        %v719 = vpow.pop %v718
        %v720 = vmul.f32 %v697, 1.442695
        %v721 = vpow.pop %v720
        %v722 = vmul.f32 %v698, 1.442695
        %v723 = vpow.pop %v722
        %v724 = vmul.f32 %v699, 1.442695
        %v725 = vpow.pop %v724
        %v726 = vmul.f32 %v700, 1.442695
        %v727 = vpow.pop %v726
        %v728 = vmul.f32 %v701, 1.442695
        %v729 = vpow.pop %v728
        %v730 = vmul.f32 %v702, 1.442695
        %v731 = vpow.pop %v730
        %v732 = vmul.f32 %v703, 1.442695
        %v733 = vpow.pop %v732
        %v734 = vmul.f32 %v704, 1.442695
        %v735 = vpow.pop %v734
        %v736 = vmul.f32 %v705, 1.442695
        %v737 = vpow.pop %v736
        %v738 = vadd.f32 %v707, 1.0
        %v739 = vadd.f32 %v709, 1.0
        %v740 = vadd.f32 %v711, 1.0
        %v741 = vadd.f32 %v713, 1.0
        %v742 = vadd.f32 %v715, 1.0
        %v743 = vadd.f32 %v717, 1.0
        %v744 = vadd.f32 %v719, 1.0
        %v745 = vadd.f32 %v721, 1.0
        %v746 = vadd.f32 %v723, 1.0
        %v747 = vadd.f32 %v725, 1.0
        %v748 = vadd.f32 %v727, 1.0
        %v749 = vadd.f32 %v729, 1.0
        %v750 = vadd.f32 %v731, 1.0
        %v751 = vadd.f32 %v733, 1.0
        %v752 = vadd.f32 %v735, 1.0
        %v753 = vadd.f32 %v737, 1.0
        %v754 = vrcp.pop %v738
        %v755 = vmul.f32 1.0, %v754
        %v756 = vrcp.pop %v739
        %v757 = vmul.f32 1.0, %v756
        %v758 = vrcp.pop %v740
        %v759 = vmul.f32 1.0, %v758
        %v760 = vrcp.pop %v741
        %v761 = vmul.f32 1.0, %v760
        %v762 = vrcp.pop %v742
        %v763 = vmul.f32 1.0, %v762
        %v764 = vrcp.pop %v743
        %v765 = vmul.f32 1.0, %v764
        %v766 = vrcp.pop %v744
        %v767 = vmul.f32 1.0, %v766
        %v768 = vrcp.pop %v745
        %v769 = vmul.f32 1.0, %v768
        %v770 = vrcp.pop %v746
        %v771 = vmul.f32 1.0, %v770
        %v772 = vrcp.pop %v747
        %v773 = vmul.f32 1.0, %v772
        %v774 = vrcp.pop %v748
        %v775 = vmul.f32 1.0, %v774
        %v776 = vrcp.pop %v749
        %v777 = vmul.f32 1.0, %v776
        %v778 = vrcp.pop %v750
        %v779 = vmul.f32 1.0, %v778
        %v780 = vrcp.pop %v751
        %v781 = vmul.f32 1.0, %v780
        %v782 = vrcp.pop %v752
        %v783 = vmul.f32 1.0, %v782
        %v784 = vrcp.pop %v753
        %v785 = vmul.f32 1.0, %v784
        %v786 = vand.u32 %v396, 1073741824
        %v787 = vand.u32 %v397, 1073741824
        %v788 = vand.u32 %v398, 1073741824
        %v789 = vand.u32 %v399, 1073741824
        %v790 = vand.u32 %v400, 1073741824
        %v791 = vand.u32 %v401, 1073741824
        %v792 = vand.u32 %v402, 1073741824
        %v793 = vand.u32 %v403, 1073741824
        %v794 = vand.u32 %v404, 1073741824
        %v795 = vand.u32 %v405, 1073741824
        %v796 = vand.u32 %v406, 1073741824
        %v797 = vand.u32 %v407, 1073741824
        %v798 = vand.u32 %v408, 1073741824
        %v799 = vand.u32 %v409, 1073741824
        %v800 = vand.u32 %v410, 1073741824
        %v801 = vand.u32 %v411, 1073741824
        %vm802 = vcmp.eq.s32.totalorder %v786, 0
        %vm803 = vcmp.eq.s32.totalorder %v787, 0
        %vm804 = vcmp.eq.s32.totalorder %v788, 0
        %vm805 = vcmp.eq.s32.totalorder %v789, 0
        %vm806 = vcmp.eq.s32.totalorder %v790, 0
        %vm807 = vcmp.eq.s32.totalorder %v791, 0
        %vm808 = vcmp.eq.s32.totalorder %v792, 0
        %vm809 = vcmp.eq.s32.totalorder %v793, 0
        %vm810 = vcmp.eq.s32.totalorder %v794, 0
        %vm811 = vcmp.eq.s32.totalorder %v795, 0
        %vm812 = vcmp.eq.s32.totalorder %v796, 0
        %vm813 = vcmp.eq.s32.totalorder %v797, 0
        %vm814 = vcmp.eq.s32.totalorder %v798, 0
        %vm815 = vcmp.eq.s32.totalorder %v799, 0
        %vm816 = vcmp.eq.s32.totalorder %v800, 0
        %vm817 = vcmp.eq.s32.totalorder %v801, 0
        %v818 = vsel %vm802, %v755, 0.0
        %v819 = vsel %vm803, %v757, 0.0
        %v820 = vsel %vm804, %v759, 0.0
        %v821 = vsel %vm805, %v761, 0.0
        %v822 = vsel %vm806, %v763, 0.0
        %v823 = vsel %vm807, %v765, 0.0
        %v824 = vsel %vm808, %v767, 0.0
        %v825 = vsel %vm809, %v769, 0.0
        %v826 = vsel %vm810, %v771, 0.0
        %v827 = vsel %vm811, %v773, 0.0
        %v828 = vsel %vm812, %v775, 0.0
        %v829 = vsel %vm813, %v777, 0.0
        %v830 = vsel %vm814, %v779, 0.0
        %v831 = vsel %vm815, %v781, 0.0
        %v832 = vsel %vm816, %v783, 0.0
        %v833 = vsel %vm817, %v785, 0.0
        %835 = vset.pattern.permute.xlu0 0
        %836 = vperm.xlu0 %835, %v395
        %v837 = vpop.permute.xlu0 %836
        %839 = vmatprep.subr.mxu0 0.0
        %840 = vmatpush1.msra.mxu0 %v818
        %841 = vmatprep.subr.mxu0 0.0
        %842 = vmatpush1.msra.mxu0 %v819
        %843 = vmatprep.subr.mxu0 0.0
        %844 = vmatpush1.msra.mxu0 %v820
        %845 = vmatprep.subr.mxu0 0.0
        %846 = vmatpush1.msra.mxu0 %v821
        %847 = vmatprep.subr.mxu0 0.0
        %848 = vmatpush1.msra.mxu0 %v822
        %849 = vmatprep.subr.mxu0 0.0
        %850 = vmatpush1.msra.mxu0 %v823
        %851 = vmatprep.subr.mxu0 0.0
        %852 = vmatpush1.msra.mxu0 %v824
        %853 = vmatprep.subr.mxu0 0.0
        %854 = vmatpush1.msra.mxu0 %v825
        %855 = vmatprep.subr.mxu0 0.0
        %856 = vmatpush1.msra.mxu0 %v826
        %857 = vmatprep.subr.mxu0 0.0
        %858 = vmatpush1.msra.mxu0 %v827
        %859 = vmatprep.subr.mxu0 0.0
        %860 = vmatpush1.msra.mxu0 %v828
        %861 = vmatprep.subr.mxu0 0.0
        %862 = vmatpush1.msra.mxu0 %v829
        %863 = vmatprep.subr.mxu0 0.0
        %864 = vmatpush1.msra.mxu0 %v830
        %865 = vmatprep.subr.mxu0 0.0
        %866 = vmatpush1.msra.mxu0 %v831
        %867 = vmatprep.subr.mxu0 0.0
        %868 = vmatpush1.msra.mxu0 %v832
        %869 = vmatprep.subr.mxu0 0.0
        %870 = vmatpush1.msra.mxu0 %v833
        %871 = vmatprep.subr.mxu0 0.0
        %872 = vmatpush1.msra.mxu0 0.0
        %873 = vmatprep.subr.mxu0 0.0
        %874 = vmatpush1.msra.mxu0 0.0
        %875 = vmatprep.subr.mxu0 0.0
        %876 = vmatpush1.msra.mxu0 0.0
        %877 = vmatprep.subr.mxu0 0.0
        %878 = vmatpush1.msra.mxu0 0.0
        %879 = vmatprep.subr.mxu0 0.0
        %880 = vmatpush1.msra.mxu0 0.0
        %881 = vmatprep.subr.mxu0 0.0
        %882 = vmatpush1.msra.mxu0 0.0
        %883 = vmatprep.subr.mxu0 0.0
        %884 = vmatpush1.msra.mxu0 0.0
        %885 = vmatprep.subr.mxu0 0.0
        %886 = vmatpush1.msra.mxu0 0.0
        %887 = vmatprep.subr.mxu0 0.0
        %888 = vmatpush1.msra.mxu0 0.0
        %889 = vmatprep.subr.mxu0 0.0
        %890 = vmatpush1.msra.mxu0 0.0
        %891 = vmatprep.subr.mxu0 0.0
        %892 = vmatpush1.msra.mxu0 0.0
        %893 = vmatprep.subr.mxu0 0.0
        %894 = vmatpush1.msra.mxu0 0.0
        %895 = vmatprep.subr.mxu0 0.0
        %896 = vmatpush1.msra.mxu0 0.0
        %897 = vmatprep.subr.mxu0 0.0
        %898 = vmatpush1.msra.mxu0 0.0
        %899 = vmatprep.subr.mxu0 0.0
        %900 = vmatpush1.msra.mxu0 0.0
        %901 = vmatprep.subr.mxu0 0.0
        %902 = vmatpush1.msra.mxu0 0.0
        %903 = vmatprep.mubr.f32.mxu0 0.0
        %904 = vmatmul.mubr.f32.gmra.mrb[0].mxu0 %v394
        %v905 = vpop.f32.mrb[0].mxu0
        %v906 = vadd.f32 %v837, %v905
        %v907 = vpop.f32.mrb[0].mxu0
        %908 = vdwg.mxu0
        %909 = vst [vmem:[%s356] sm:$0xf] %v906
        %s910 = sand.u32 %s164, 1
        %s911 = scalar_lea.sflag [#allocation4], %s910
        %s912 = sand.u32 %s164, 1
        %s913 = smul.addr %s912, 4
        %s914 = scalar_lea.vmem [#allocation3], %s913
        // Predicated region
        $region83: #{tpu_custom_call.1} parent=77 // pred_check
          %p915 = pneg %p174
        $region84: #{tpu_custom_call.1} parent=77 // pred_check_branch
          %917 = sbr.rel (%p915) target = $region86
        $region85: #{tpu_custom_call.1} parent=77 // pred_region
          %s919 = ssub.s32 64, 64
          %920 = vsyncadd %s911, %s919
          %s921 = smul.addr %s20, 64
          %s922 = scalar_lea.hbm %s6, %s921
          %s924 = sshll.u32 %s914, 4
          %s925 = int_to_ptr.vmem [resolvable:$true] %s924
          %927 = dma.vmem_to_hbm [thread:$0]  %s925, 64, %s922, %s911
        $region86: #{tpu_custom_call.1} parent=77 // pred_fallthru
          _
      $region78: #{tpu_custom_call.1} parent=5 // pred_fallthru
        _
      %p928 = scmp.le.s32.totalorder 2, %s15
      // Predicated region
      $region87: #{tpu_custom_call.1} parent=5 // pred_check
        %p929 = pneg %p928
      $region88: #{tpu_custom_call.1} parent=5 // pred_check_branch
        %931 = sbr.rel (%p929) target = $region90
      $region89: #{tpu_custom_call.1} parent=5 // pred_region
        %s932 = ssub.s32 %s15, 2
        // Predicated region
        $region91: #{tpu_custom_call.1} parent=89 // pred_check
          %p933 = pneg %p180
        $region92: #{tpu_custom_call.1} parent=89 // pred_check_branch
          %935 = sbr.rel (%p933) target = $region94
        $region93: #{tpu_custom_call.1} parent=89 // pred_region
          %s936 = sand.u32 %s165, 1
          %s937 = scalar_lea.sflag [#allocation4], %s936
          %s938 = sand.u32 %s165, 1
          %s939 = smul.addr %s938, 4
          %s940 = scalar_lea.vmem [#allocation3], %s939
          %941 = dma.done %s937, 64
        $region94: #{tpu_custom_call.1} parent=89 // pred_fallthru
          _
      $region90: #{tpu_custom_call.1} parent=5 // pred_fallthru
        _
    $region6: #{tpu_custom_call.1} parent=1 // loop_footer
      %s19 = sadd.s32 1, %s15
    $region7: #{tpu_custom_call.1} parent=1 // loop_footer_branch
      %14 = sbr.rel target = $region3
    $region8: #{tpu_custom_call.1} parent=1 // loop_exit
      _
    %942 = vsyncpa [#allocation4], 1
    %s943 = scalar_lea.sflag [#allocation4], 1
    %944 = vsyncpa %s943, 1

</llo_original>
